<compile_context>
chip_gen: v5e
topology: v5e:2x2
jax: 0.10.0
libtpu: 0.0.40
codegen_flags: <defaults>
</compile_context>

<pallas_src>
import jax
import jax.numpy as jnp
import numpy as np
from jax.experimental import pallas as pl
from jax.experimental.pallas import tpu as pltpu

_LANE = 128
_ROW_GRANULE = 32          # int8 sublane tiling granule (also covers f32's 8)
_SMALL_N = 256 * 1024      # below this a fused XLA elementwise graph wins


def _elementwise_kernel(a_ref, b_ref, arith_ref, mask_ref):
    a = a_ref[...]
    b = b_ref[...]
    eps = jnp.asarray(1e-6, dtype=a.dtype)   # matches torch: a / (b + 1e-06)
    # Arithmetic results -> single stacked output slab (one output DMA).
    arith_ref[0] = a + b
    arith_ref[1] = a - b
    arith_ref[2] = a * b
    arith_ref[3] = a / (b + eps)
    # Comparison masks as int8 (Mosaic-safe, 1/4 the store bytes of int32).
    mask_ref[0] = (a > b).astype(jnp.int8)
    mask_ref[1] = (a < b).astype(jnp.int8)
    mask_ref[2] = (a == b).astype(jnp.int8)


def _round_up(x, m):
    return ((x + m - 1) // m) * m


def _max_tile_rows():
    """Generation-aware tile cap (the op is HBM-bound on all chips)."""
    try:
        kind = jax.devices()[0].device_kind.lower()
    except Exception:
        return 1024
    # v6e / v7x: 32 MiB scoped VMEM default -> 2048-row tiles (13.5 MiB
    # double-buffered across all 4 live slabs) amortize per-step overhead.
    if "v6" in kind or "7" in kind:
        return 2048
    # v5e and older: 16 MiB scoped default -> stay at 1024 rows (6.75 MiB).
    return 1024


def _choose_tile_rows(rows):
    max_rows = _max_tile_rows()
    if rows <= max_rows:
        # Split into ~2 tiles so v7x's two TensorCores both get work;
        # fall back to a single full-extent block for tiny inputs.
        half = _round_up(pl.cdiv(rows, 2), _ROW_GRANULE)
        return half if half < rows else rows
    return max_rows


def _forward_jnp(a, b):
    eps = jnp.asarray(1e-6, dtype=a.dtype)
    return (a + b, a - b, a * b, a / (b + eps), a > b, a < b, a == b)


def pt_module_forward(input_tensor1, input_tensor2, use_pallas=None):
    assert input_tensor1.shape == input_tensor2.shape
    assert input_tensor1.dtype == input_tensor2.dtype
    orig_shape = input_tensor1.shape
    dtype = input_tensor1.dtype

    n = int(np.prod(orig_shape)) if orig_shape else 1
    if use_pallas is None:
        use_pallas = n >= _SMALL_N
    if not use_pallas:
        # Small-input fast path: fixed pallas_call/DMA setup dominates here.
        return _forward_jnp(input_tensor1, input_tensor2)

    rows = pl.cdiv(n, _LANE)
    padded_n = rows * _LANE            # pad only to the 128-lane granule
    tile_rows = _choose_tile_rows(rows)
    grid = (pl.cdiv(rows, tile_rows),)  # ragged last block handled by Pallas

    def to_slab(x):
        flat = x.reshape(-1)
        if padded_n != n:              # only for non-128-aligned counts
            flat = jnp.pad(flat, (0, padded_n - n))
        return flat.reshape(rows, _LANE)

    a2d = to_slab(input_tensor1)
    b2d = to_slab(input_tensor2)

    in_spec = pl.BlockSpec((tile_rows, _LANE), lambda i: (i, 0))
    arith_spec = pl.BlockSpec((4, tile_rows, _LANE), lambda i: (0, i, 0))
    mask_spec = pl.BlockSpec((3, tile_rows, _LANE), lambda i: (0, i, 0))

    arith_slab, mask_slab = pl.pallas_call(
        _elementwise_kernel,
        grid=grid,
        in_specs=[in_spec, in_spec],
        out_specs=(arith_spec, mask_spec),
        out_shape=(
            jax.ShapeDtypeStruct((4, rows, _LANE), dtype),
            jax.ShapeDtypeStruct((3, rows, _LANE), jnp.int8),
        ),
        compiler_params=pltpu.CompilerParams(
            dimension_semantics=("parallel",)),
    )(a2d, b2d)

    def unslab(x2d):
        if padded_n == n:
            return x2d.reshape(orig_shape)      # free reshape, no copy
        return x2d.reshape(-1)[:n].reshape(orig_shape)

    add = unslab(arith_slab[0])
    sub = unslab(arith_slab[1])
    mul = unslab(arith_slab[2])
    div = unslab(arith_slab[3])
    # bool cast fuses with the unslab reshape/slice in XLA.
    gt = unslab(mask_slab[0]).astype(jnp.bool_)
    lt = unslab(mask_slab[1]).astype(jnp.bool_)
    eq = unslab(mask_slab[2]).astype(jnp.bool_)
    return add, sub, mul, div, gt, lt, eq


def _check(outs, ref):
    for got, exp in zip(outs, ref):
        if got.dtype == jnp.bool_:
            np.testing.assert_array_equal(np.asarray(got), np.asarray(exp))
        else:
            np.testing.assert_allclose(np.asarray(got), np.asarray(exp),
                                       rtol=1e-6, atol=1e-6)


if __name__ == "__main__":
    key = jax.random.PRNGKey(0)
    k1, k2 = jax.random.split(key)

    # Force the Pallas path so the kernel itself is exercised even on small
    # shapes (the auto path would take the jnp fast path below _SMALL_N).
    run_pallas = jax.jit(lambda a, b: pt_module_forward(a, b, use_pallas=True))

    # Case 1: NCHW-like, 128-aligned element count (no padding path).
    shape = (2, 4, 16, 16)
    x1 = jax.random.normal(k1, shape, dtype=jnp.float32)
    x2 = jax.random.normal(k2, shape, dtype=jnp.float32)
    # Inject a few exact-equal elements so the == branch is exercised.
    x2 = x2.at[0, 0, 0, :4].set(x1[0, 0, 0, :4])
    outs = jax.block_until_ready(run_pallas(x1, x2))
    _check(outs, _forward_jnp(x1, x2))

    # Case 2: awkward, non-128-aligned shape -> pad + ragged last block +
    # a 2-step grid (covers the v7x two-TensorCore sharding path).
    shape2 = (3, 5, 17, 19)
    y1 = jax.random.normal(k1, shape2, dtype=jnp.float32)
    y2 = jax.random.normal(k2, shape2, dtype=jnp.float32)
    y2 = y2.at[0, 0, 0, :3].set(y1[0, 0, 0, :3])
    outs2 = jax.block_until_ready(run_pallas(y1, y2))
    _check(outs2, _forward_jnp(y1, y2))

    print("KERNEL_OK")
</pallas_src>

<mosaic_0001>
module attributes {stable_mosaic.version = 11 : i64} {
  func.func @_elementwise_kernel(%arg0: i32, %arg1: memref<16x128xf32, #tpu.memory_space<vmem>>, %arg2: memref<16x128xf32, #tpu.memory_space<vmem>>, %arg3: memref<4x16x128xf32, #tpu.memory_space<vmem>>, %arg4: memref<3x16x128xi8, #tpu.memory_space<vmem>>) attributes {dimension_semantics = [#tpu.dimension_semantics<parallel>], iteration_bounds = array<i64: 1>, scalar_prefetch = 0 : i64, scratch_operands = 0 : i64, tpu.core_type = #tpu.core_type<tc>, window_params = [{transform_indices = @transform_0, window_bounds = array<i64: 16, 128>}, {transform_indices = @transform_1, window_bounds = array<i64: 16, 128>}, {transform_indices = @transform_2, window_bounds = array<i64: 4, 16, 128>}, {transform_indices = @transform_3, window_bounds = array<i64: 3, 16, 128>}]} {
    %c0 = arith.constant 0 : index
    %c0_0 = arith.constant 0 : index
    %0 = vector.load %arg1[%c0, %c0_0] : memref<16x128xf32, #tpu.memory_space<vmem>>, vector<16x128xf32>
    %c0_1 = arith.constant 0 : index
    %c0_2 = arith.constant 0 : index
    %1 = vector.load %arg2[%c0_1, %c0_2] : memref<16x128xf32, #tpu.memory_space<vmem>>, vector<16x128xf32>
    %2 = arith.addf %0, %1 : vector<16x128xf32>
    %c0_3 = arith.constant 0 : index
    %c0_4 = arith.constant 0 : index
    %c0_5 = arith.constant 0 : index
    %3 = vector.load %arg3[%c0_3, %c0_4, %c0_5] : memref<4x16x128xf32, #tpu.memory_space<vmem>>, vector<1x16x128xf32>
    %4 = vector.shape_cast %3 : vector<1x16x128xf32> to vector<16x128xf32>
    %5 = vector.shape_cast %2 : vector<16x128xf32> to vector<1x16x128xf32>
    tpu.vector_store %arg3[%c0_3, %c0_4, %c0_5], %5 {strides = array<i32>} : memref<4x16x128xf32, #tpu.memory_space<vmem>>, vector<1x16x128xf32>,
    %6 = arith.subf %0, %1 : vector<16x128xf32>
    %c1 = arith.constant 1 : index
    %c0_6 = arith.constant 0 : index
    %c0_7 = arith.constant 0 : index
    %7 = vector.load %arg3[%c1, %c0_6, %c0_7] : memref<4x16x128xf32, #tpu.memory_space<vmem>>, vector<1x16x128xf32>
    %8 = vector.shape_cast %7 : vector<1x16x128xf32> to vector<16x128xf32>
    %9 = vector.shape_cast %6 : vector<16x128xf32> to vector<1x16x128xf32>
    tpu.vector_store %arg3[%c1, %c0_6, %c0_7], %9 {strides = array<i32>} : memref<4x16x128xf32, #tpu.memory_space<vmem>>, vector<1x16x128xf32>,
    %10 = arith.mulf %0, %1 : vector<16x128xf32>
    %c2 = arith.constant 2 : index
    %c0_8 = arith.constant 0 : index
    %c0_9 = arith.constant 0 : index
    %11 = vector.load %arg3[%c2, %c0_8, %c0_9] : memref<4x16x128xf32, #tpu.memory_space<vmem>>, vector<1x16x128xf32>
    %12 = vector.shape_cast %11 : vector<1x16x128xf32> to vector<16x128xf32>
    %13 = vector.shape_cast %10 : vector<16x128xf32> to vector<1x16x128xf32>
    tpu.vector_store %arg3[%c2, %c0_8, %c0_9], %13 {strides = array<i32>} : memref<4x16x128xf32, #tpu.memory_space<vmem>>, vector<1x16x128xf32>,
    %cst = arith.constant 9.99999997E-7 : f32
    %14 = vector.broadcast %cst : f32 to vector<16x128xf32>
    %15 = arith.addf %1, %14 : vector<16x128xf32>
    %16 = arith.divf %0, %15 : vector<16x128xf32>
    %c3 = arith.constant 3 : index
    %c0_10 = arith.constant 0 : index
    %c0_11 = arith.constant 0 : index
    %17 = vector.load %arg3[%c3, %c0_10, %c0_11] : memref<4x16x128xf32, #tpu.memory_space<vmem>>, vector<1x16x128xf32>
    %18 = vector.shape_cast %17 : vector<1x16x128xf32> to vector<16x128xf32>
    %19 = vector.shape_cast %16 : vector<16x128xf32> to vector<1x16x128xf32>
    tpu.vector_store %arg3[%c3, %c0_10, %c0_11], %19 {strides = array<i32>} : memref<4x16x128xf32, #tpu.memory_space<vmem>>, vector<1x16x128xf32>,
    %20 = arith.cmpf ogt, %0, %1 : vector<16x128xf32>
    %21 = arith.extui %20 : vector<16x128xi1> to vector<16x128xi8>
    %c0_12 = arith.constant 0 : index
    %c0_13 = arith.constant 0 : index
    %c0_14 = arith.constant 0 : index
    %22 = vector.load %arg4[%c0_12, %c0_13, %c0_14] : memref<3x16x128xi8, #tpu.memory_space<vmem>>, vector<1x16x128xi8>
    %23 = vector.shape_cast %22 : vector<1x16x128xi8> to vector<16x128xi8>
    %24 = vector.shape_cast %21 : vector<16x128xi8> to vector<1x16x128xi8>
    tpu.vector_store %arg4[%c0_12, %c0_13, %c0_14], %24 {strides = array<i32>} : memref<3x16x128xi8, #tpu.memory_space<vmem>>, vector<1x16x128xi8>,
    %25 = arith.cmpf olt, %0, %1 : vector<16x128xf32>
    %26 = arith.extui %25 : vector<16x128xi1> to vector<16x128xi8>
    %c1_15 = arith.constant 1 : index
    %c0_16 = arith.constant 0 : index
    %c0_17 = arith.constant 0 : index
    %27 = vector.load %arg4[%c1_15, %c0_16, %c0_17] : memref<3x16x128xi8, #tpu.memory_space<vmem>>, vector<1x16x128xi8>
    %28 = vector.shape_cast %27 : vector<1x16x128xi8> to vector<16x128xi8>
    %29 = vector.shape_cast %26 : vector<16x128xi8> to vector<1x16x128xi8>
    tpu.vector_store %arg4[%c1_15, %c0_16, %c0_17], %29 {strides = array<i32>} : memref<3x16x128xi8, #tpu.memory_space<vmem>>, vector<1x16x128xi8>,
    %30 = arith.cmpf oeq, %0, %1 : vector<16x128xf32>
    %31 = arith.extui %30 : vector<16x128xi1> to vector<16x128xi8>
    %c2_18 = arith.constant 2 : index
    %c0_19 = arith.constant 0 : index
    %c0_20 = arith.constant 0 : index
    %32 = vector.load %arg4[%c2_18, %c0_19, %c0_20] : memref<3x16x128xi8, #tpu.memory_space<vmem>>, vector<1x16x128xi8>
    %33 = vector.shape_cast %32 : vector<1x16x128xi8> to vector<16x128xi8>
    %34 = vector.shape_cast %31 : vector<16x128xi8> to vector<1x16x128xi8>
    tpu.vector_store %arg4[%c2_18, %c0_19, %c0_20], %34 {strides = array<i32>} : memref<3x16x128xi8, #tpu.memory_space<vmem>>, vector<1x16x128xi8>,
    return
  }
  func.func @transform_0(%arg0: i32) -> (i32, i32) {
    %c0_i32 = arith.constant 0 : i32
    %c0_i32_0 = arith.constant 0 : i32
    return %arg0, %c0_i32 : i32, i32
  }
  func.func @transform_1(%arg0: i32) -> (i32, i32) {
    %c0_i32 = arith.constant 0 : i32
    %c0_i32_0 = arith.constant 0 : i32
    return %arg0, %c0_i32 : i32, i32
  }
  func.func @transform_2(%arg0: i32) -> (i32, i32, i32) {
    %c0_i32 = arith.constant 0 : i32
    %c0_i32_0 = arith.constant 0 : i32
    %c0_i32_1 = arith.constant 0 : i32
    return %c0_i32, %arg0, %c0_i32_0 : i32, i32, i32
  }
  func.func @transform_3(%arg0: i32) -> (i32, i32, i32) {
    %c0_i32 = arith.constant 0 : i32
    %c0_i32_0 = arith.constant 0 : i32
    %c0_i32_1 = arith.constant 0 : i32
    return %c0_i32, %arg0, %c0_i32_0 : i32, i32, i32
  }
}

</mosaic_0001>

<llo_original>
// kernel: squeeze.10
$region0: #{squeeze.10}
  %s0 = inlined_call_operand.vmem [shape: f32[1,16,128], index: 0, kind: input, shape index: {}]
  %s1 = inlined_call_operand.hbm [shape: f32[2,4,16,16], index: 1, kind: output, shape index: {}]
  $region1: #{squeeze.10} parent=0
    #allocation0 [shape = 'u8[65536]{0}', space=vmem, size = 0x10000, scoped, tag = 'operand span for operand 1']
    #allocation1 [shape = 's32[1]{0}', space=sflag, size = 0x4, scoped, tag = 'scoped memory for squeeze.10']
    %2 = vsyncpa [#allocation1], 0
    %v3 = vld [vmem:[%s0] sm:$0xff]
    %vm4 = vcmask 130048
    %5 = vst.msk [vmem:[#allocation0] ss:$8 sm:$0xf] %vm4, %v3
    %6 = vst.msk [vmem:[#allocation0] ss:$8 sm:$0xf0] %vm4, %v3
    %s7 = scalar_lea.vmem %s0, 8
    %v8 = vld [vmem:[%s7] sm:$0xff]
    %vm9 = vcmask 130048
    %s10 = scalar_lea.vmem [#allocation0], 64
    %11 = vst.msk [vmem:[%s10] ss:$8 sm:$0xf] %vm9, %v8
    %s12 = scalar_lea.vmem [#allocation0], 64
    %13 = vst.msk [vmem:[%s12] ss:$8 sm:$0xf0] %vm9, %v8
    %v14 = vld [vmem:[%s0] sm:$0xff]
    %15 = vrot.lane.b32.xlu0 %v14, 112
    %v16 = vpop.permute.xlu0 %15
    %vm17 = vcmask 130048
    %s18 = scalar_lea.vmem [#allocation0], 1
    %19 = vst.msk [vmem:[%s18] ss:$8 sm:$0xf] %vm17, %v16
    %s20 = scalar_lea.vmem [#allocation0], 1
    %21 = vst.msk [vmem:[%s20] ss:$8 sm:$0xf0] %vm17, %v16
    %s22 = scalar_lea.vmem %s0, 8
    %v23 = vld [vmem:[%s22] sm:$0xff]
    %24 = vrot.lane.b32.xlu0 %v23, 112
    %v25 = vpop.permute.xlu0 %24
    %vm26 = vcmask 130048
    %s27 = scalar_lea.vmem [#allocation0], 65
    %28 = vst.msk [vmem:[%s27] ss:$8 sm:$0xf] %vm26, %v25
    %s29 = scalar_lea.vmem [#allocation0], 65
    %30 = vst.msk [vmem:[%s29] ss:$8 sm:$0xf0] %vm26, %v25
    %v31 = vld [vmem:[%s0] sm:$0xff]
    %32 = vrot.lane.b32.xlu0 %v31, 96
    %v33 = vpop.permute.xlu0 %32
    %vm34 = vcmask 130048
    %s35 = scalar_lea.vmem [#allocation0], 2
    %36 = vst.msk [vmem:[%s35] ss:$8 sm:$0xf] %vm34, %v33
    %s37 = scalar_lea.vmem [#allocation0], 2
    %38 = vst.msk [vmem:[%s37] ss:$8 sm:$0xf0] %vm34, %v33
    %s39 = scalar_lea.vmem %s0, 8
    %v40 = vld [vmem:[%s39] sm:$0xff]
    %41 = vrot.lane.b32.xlu0 %v40, 96
    %v42 = vpop.permute.xlu0 %41
    %vm43 = vcmask 130048
    %s44 = scalar_lea.vmem [#allocation0], 66
    %45 = vst.msk [vmem:[%s44] ss:$8 sm:$0xf] %vm43, %v42
    %s46 = scalar_lea.vmem [#allocation0], 66
    %47 = vst.msk [vmem:[%s46] ss:$8 sm:$0xf0] %vm43, %v42
    %v48 = vld [vmem:[%s0] sm:$0xff]
    %49 = vrot.lane.b32.xlu0 %v48, 80
    %v50 = vpop.permute.xlu0 %49
    %vm51 = vcmask 130048
    %s52 = scalar_lea.vmem [#allocation0], 3
    %53 = vst.msk [vmem:[%s52] ss:$8 sm:$0xf] %vm51, %v50
    %s54 = scalar_lea.vmem [#allocation0], 3
    %55 = vst.msk [vmem:[%s54] ss:$8 sm:$0xf0] %vm51, %v50
    %s56 = scalar_lea.vmem %s0, 8
    %v57 = vld [vmem:[%s56] sm:$0xff]
    %58 = vrot.lane.b32.xlu0 %v57, 80
    %v59 = vpop.permute.xlu0 %58
    %vm60 = vcmask 130048
    %s61 = scalar_lea.vmem [#allocation0], 67
    %62 = vst.msk [vmem:[%s61] ss:$8 sm:$0xf] %vm60, %v59
    %s63 = scalar_lea.vmem [#allocation0], 67
    %64 = vst.msk [vmem:[%s63] ss:$8 sm:$0xf0] %vm60, %v59
    %v65 = vld [vmem:[%s0] sm:$0xff]
    %66 = vrot.lane.b32.xlu0 %v65, 64
    %v67 = vpop.permute.xlu0 %66
    %vm68 = vcmask 130048
    %s69 = scalar_lea.vmem [#allocation0], 4
    %70 = vst.msk [vmem:[%s69] ss:$8 sm:$0xf] %vm68, %v67
    %s71 = scalar_lea.vmem [#allocation0], 4
    %72 = vst.msk [vmem:[%s71] ss:$8 sm:$0xf0] %vm68, %v67
    %s73 = scalar_lea.vmem %s0, 8
    %v74 = vld [vmem:[%s73] sm:$0xff]
    %75 = vrot.lane.b32.xlu0 %v74, 64
    %v76 = vpop.permute.xlu0 %75
    %vm77 = vcmask 130048
    %s78 = scalar_lea.vmem [#allocation0], 68
    %79 = vst.msk [vmem:[%s78] ss:$8 sm:$0xf] %vm77, %v76
    %s80 = scalar_lea.vmem [#allocation0], 68
    %81 = vst.msk [vmem:[%s80] ss:$8 sm:$0xf0] %vm77, %v76
    %v82 = vld [vmem:[%s0] sm:$0xff]
    %83 = vrot.lane.b32.xlu0 %v82, 48
    %v84 = vpop.permute.xlu0 %83
    %vm85 = vcmask 130048
    %s86 = scalar_lea.vmem [#allocation0], 5
    %87 = vst.msk [vmem:[%s86] ss:$8 sm:$0xf] %vm85, %v84
    %s88 = scalar_lea.vmem [#allocation0], 5
    %89 = vst.msk [vmem:[%s88] ss:$8 sm:$0xf0] %vm85, %v84
    %s90 = scalar_lea.vmem %s0, 8
    %v91 = vld [vmem:[%s90] sm:$0xff]
    %92 = vrot.lane.b32.xlu0 %v91, 48
    %v93 = vpop.permute.xlu0 %92
    %vm94 = vcmask 130048
    %s95 = scalar_lea.vmem [#allocation0], 69
    %96 = vst.msk [vmem:[%s95] ss:$8 sm:$0xf] %vm94, %v93
    %s97 = scalar_lea.vmem [#allocation0], 69
    %98 = vst.msk [vmem:[%s97] ss:$8 sm:$0xf0] %vm94, %v93
    %v99 = vld [vmem:[%s0] sm:$0xff]
    %100 = vrot.lane.b32.xlu0 %v99, 32
    %v101 = vpop.permute.xlu0 %100
    %vm102 = vcmask 130048
    %s103 = scalar_lea.vmem [#allocation0], 6
    %104 = vst.msk [vmem:[%s103] ss:$8 sm:$0xf] %vm102, %v101
    %s105 = scalar_lea.vmem [#allocation0], 6
    %106 = vst.msk [vmem:[%s105] ss:$8 sm:$0xf0] %vm102, %v101
    %s107 = scalar_lea.vmem %s0, 8
    %v108 = vld [vmem:[%s107] sm:$0xff]
    %109 = vrot.lane.b32.xlu0 %v108, 32
    %v110 = vpop.permute.xlu0 %109
    %vm111 = vcmask 130048
    %s112 = scalar_lea.vmem [#allocation0], 70
    %113 = vst.msk [vmem:[%s112] ss:$8 sm:$0xf] %vm111, %v110
    %s114 = scalar_lea.vmem [#allocation0], 70
    %115 = vst.msk [vmem:[%s114] ss:$8 sm:$0xf0] %vm111, %v110
    %v116 = vld [vmem:[%s0] sm:$0xff]
    %117 = vrot.lane.b32.xlu0 %v116, 16
    %v118 = vpop.permute.xlu0 %117
    %vm119 = vcmask 130048
    %s120 = scalar_lea.vmem [#allocation0], 7
    %121 = vst.msk [vmem:[%s120] ss:$8 sm:$0xf] %vm119, %v118
    %s122 = scalar_lea.vmem [#allocation0], 7
    %123 = vst.msk [vmem:[%s122] ss:$8 sm:$0xf0] %vm119, %v118
    %s124 = scalar_lea.vmem %s0, 8
    %v125 = vld [vmem:[%s124] sm:$0xff]
    %126 = vrot.lane.b32.xlu0 %v125, 16
    %v127 = vpop.permute.xlu0 %126
    %vm128 = vcmask 130048
    %s129 = scalar_lea.vmem [#allocation0], 71
    %130 = vst.msk [vmem:[%s129] ss:$8 sm:$0xf] %vm128, %v127
    %s131 = scalar_lea.vmem [#allocation0], 71
    %132 = vst.msk [vmem:[%s131] ss:$8 sm:$0xf0] %vm128, %v127
    %134 = vsyncadd [#allocation1], 0
    %s136 = sshll.u32 [#allocation0], 4
    %s137 = int_to_ptr.vmem [resolvable:$true] %s136
    %s138 = sshll.u32 %s1, 4
    %s139 = int_to_ptr.hbm [resolvable:$true] %s138
    %141 = dma.vmem_to_hbm [thread:$0]  %s137, 2048, %s139, [#allocation1]
    %143 = dma.done [#allocation1], 2048
    %144 = vsyncpa [#allocation1], 1

// kernel: _lambda_.1
$region0: #{_lambda_.1}
  #allocation0 [shape = 'u32[]', space=smem, size = 0x4, offset = 0x4, fixed_abs, tag = 'smem constant byte address 0x4 - core index']
  #allocation1 [shape = 'u32[72,128]{1,0:T(1,128)}', space=vmem, size = 0x9000, scoped, tag = 'internal scratch']
  %s0 = inlined_call_operand.vmem [shape: f32[16,128], index: 0, kind: input, shape index: {}]
  %s1 = inlined_call_operand.vmem [shape: f32[16,128], index: 1, kind: input, shape index: {}]
  %s2 = inlined_call_operand.vmem [shape: f32[4,16,128], index: 2, kind: output, shape index: {0}]
  %s3 = inlined_call_operand.vmem [shape: s8[3,16,128], index: 3, kind: output, shape index: {1}]
  %4 = xla_tuple %s2, %s3
  %s5 = sld [smem:[#allocation0]]
  $region26: #{_lambda_.1} parent=0
    _
  %s7 = ssub.s32 1, %s5
  %s8 = scalar_select 0, %s7, %s5
  // Predicated region
  $region2: #{_lambda_.1} parent=0 // pred_check
    _
  $region3: #{_lambda_.1} parent=0 // pred_check_branch
    %10 = sbr.rel (0) target = $region5
  $region4: #{_lambda_.1} parent=0 // pred_region
    _
  $region5: #{_lambda_.1} parent=0 // pred_fallthru
    _
  // Predicated region
  $region6: #{_lambda_.1} parent=0 // pred_check
    _
  $region7: #{_lambda_.1} parent=0 // pred_check_branch
    %12 = sbr.rel (0) target = $region9
  $region8: #{_lambda_.1} parent=0 // pred_region
    _
  $region9: #{_lambda_.1} parent=0 // pred_fallthru
    _
  %v15 = vld [vmem:[%s0] sm:$0xff]
  %v16 = vld [vmem:[%s0 + $0x8] sm:$0xff]
  %v17 = vld [vmem:[%s1] sm:$0xff]
  %v18 = vld [vmem:[%s1 + $0x8] sm:$0xff]
  %v19 = vadd.f32 %v15, %v17
  %v20 = vadd.f32 %v16, %v18
  %21 = vst [vmem:[%s2] sm:$0xff] %v19
  %22 = vst [vmem:[%s2 + $0x8] sm:$0xff] %v20
  %v23 = vsub.f32 %v15, %v17
  %v24 = vsub.f32 %v16, %v18
  %s25 = scalar_lea.vmem %s2, 16
  %26 = vst [vmem:[%s25] sm:$0xff] %v23
  %27 = vst [vmem:[%s25 + $0x8] sm:$0xff] %v24
  %v28 = vmul.f32 %v15, %v17
  %v29 = vmul.f32 %v16, %v18
  %s30 = scalar_lea.vmem %s2, 32
  %31 = vst [vmem:[%s30] sm:$0xff] %v28
  %32 = vst [vmem:[%s30 + $0x8] sm:$0xff] %v29
  %v33 = vadd.f32 %v17, 1e-06
  %v34 = vadd.f32 %v18, 1e-06
  %v35 = vrcp.pop %v33
  %v36 = vmul.f32 %v33, %v35
  %v37 = vsub.f32 1.0, %v36
  %v38 = vmul.f32 %v35, %v37
  %v39 = vadd.f32 %v35, %v38
  %vm40 = vweird.f32 %v33
  %vm41 = vweird.f32 %v35
  %vm42 = vmor %vm40, %vm41
  %v43 = vsel %vm42, %v35, %v39
  %v44 = vand.u32 2147483647, %v33
  %vm45 = vcmp.eq.f32.partialorder %v44, 8.507059e+37
  %v46 = vand.u32 %v33, 2147483648
  %v47 = vor.u32 1.1754944e-38, %v46
  %v48 = vsel %vm45, %v47, %v43
  %v49 = vmul.f32 %v15, %v48
  %v50 = vrcp.pop %v34
  %v51 = vmul.f32 %v34, %v50
  %v52 = vsub.f32 1.0, %v51
  %v53 = vmul.f32 %v50, %v52
  %v54 = vadd.f32 %v50, %v53
  %vm55 = vweird.f32 %v34
  %vm56 = vweird.f32 %v50
  %vm57 = vmor %vm55, %vm56
  %v58 = vsel %vm57, %v50, %v54
  %v59 = vand.u32 2147483647, %v34
  %vm60 = vcmp.eq.f32.partialorder %v59, 8.507059e+37
  %v61 = vand.u32 %v34, 2147483648
  %v62 = vor.u32 1.1754944e-38, %v61
  %v63 = vsel %vm60, %v62, %v58
  %v64 = vmul.f32 %v16, %v63
  %s65 = scalar_lea.vmem %s2, 48
  %66 = vst [vmem:[%s65] sm:$0xff] %v49
  %67 = vst [vmem:[%s65 + $0x8] sm:$0xff] %v64
  %vm68 = vcmp.gt.f32.partialorder %v15, %v17
  %vm69 = vcmp.gt.f32.partialorder %v16, %v18
  %vm70 = vmpackc.low %vm69, %vm68
  %v71 = vsel %vm70, 16711935, 0
  %v72 = vsel %vm70, 16711935, 0
  %v73 = vpack.c.b8 %v72, %v71
  %vm74 = vnez %v73
  %v75 = vsel %vm74, 16843009, 0
  %v76 = vunpack.c.0.s8 %v75
  %v77 = vunpack.c.1.s8 %v75
  %v78 = vpack.c.b16 %v76, %v76
  %v79 = vpack.c.b8 %v78, %v78
  %v80 = vpack.c.b16 %v77, %v77
  %v81 = vpack.c.b8 %v80, %v80
  %82 = vst [vmem:[%s3] sm:$0x3] %v79
  %83 = vst [vmem:[%s3 + $0x2] sm:$0x3] %v81
  %vm84 = vcmp.lt.f32.partialorder %v15, %v17
  %vm85 = vcmp.lt.f32.partialorder %v16, %v18
  %vm86 = vmpackc.low %vm85, %vm84
  %v87 = vsel %vm86, 16711935, 0
  %v88 = vsel %vm86, 16711935, 0
  %v89 = vpack.c.b8 %v88, %v87
  %vm90 = vnez %v89
  %v91 = vsel %vm90, 16843009, 0
  %v92 = vunpack.c.0.s8 %v91
  %v93 = vunpack.c.1.s8 %v91
  %v94 = vpack.c.b16 %v92, %v92
  %v95 = vpack.c.b8 %v94, %v94
  %v96 = vpack.c.b16 %v93, %v93
  %v97 = vpack.c.b8 %v96, %v96
  %s98 = scalar_lea.vmem %s3, 4
  %99 = vst [vmem:[%s98] sm:$0x3] %v95
  %100 = vst [vmem:[%s98 + $0x2] sm:$0x3] %v97
  %vm101 = vcmp.eq.f32.partialorder %v15, %v17
  %vm102 = vcmp.eq.f32.partialorder %v16, %v18
  %vm103 = vmpackc.low %vm102, %vm101
  %v104 = vsel %vm103, 16711935, 0
  %v105 = vsel %vm103, 16711935, 0
  %v106 = vpack.c.b8 %v105, %v104
  %vm107 = vnez %v106
  %v108 = vsel %vm107, 16843009, 0
  %v109 = vunpack.c.0.s8 %v108
  %v110 = vunpack.c.1.s8 %v108
  %v111 = vpack.c.b16 %v109, %v109
  %v112 = vpack.c.b8 %v111, %v111
  %v113 = vpack.c.b16 %v110, %v110
  %v114 = vpack.c.b8 %v113, %v113
  %s115 = scalar_lea.vmem %s3, 8
  %116 = vst [vmem:[%s115] sm:$0x3] %v112
  %117 = vst [vmem:[%s115 + $0x2] sm:$0x3] %v114
  // Predicated region
  $region10: #{_lambda_.1} parent=0 // pred_check
    _
  $region11: #{_lambda_.1} parent=0 // pred_check_branch
    %119 = sbr.rel (0) target = $region13
  $region12: #{_lambda_.1} parent=0 // pred_region
    _
  $region13: #{_lambda_.1} parent=0 // pred_fallthru
    _
  // Predicated region
  $region14: #{_lambda_.1} parent=0 // pred_check
    _
  $region15: #{_lambda_.1} parent=0 // pred_check_branch
    %121 = sbr.rel (0) target = $region17
  $region16: #{_lambda_.1} parent=0 // pred_region
    _
  $region17: #{_lambda_.1} parent=0 // pred_fallthru
    _
  // Predicated region
  $region18: #{_lambda_.1} parent=0 // pred_check
    _
  $region19: #{_lambda_.1} parent=0 // pred_check_branch
    %123 = sbr.rel (0) target = $region21
  $region20: #{_lambda_.1} parent=0 // pred_region
    _
  $region21: #{_lambda_.1} parent=0 // pred_fallthru
    _
  // Predicated region
  $region22: #{_lambda_.1} parent=0 // pred_check
    _
  $region23: #{_lambda_.1} parent=0 // pred_check_branch
    %125 = sbr.rel (0) target = $region25
  $region24: #{_lambda_.1} parent=0 // pred_region
    _
  $region25: #{_lambda_.1} parent=0 // pred_fallthru
    _

</llo_original>
